<compile_context>
chip_gen: v6e
topology: v6e:2x2x1
jax: 0.10.0
libtpu: 0.0.40
codegen_flags: <defaults>
</compile_context>

<pallas_src>
import functools

import jax
import jax.numpy as jnp
from jax.experimental import pallas as pl
from jax.experimental.pallas import tpu as pltpu

HID1, HID2, HID3 = 128, 64, 32


# ----------------------------------------------------------------------------
# Kernel: fused 4-layer MLP, bf16 MXU inputs / f32 accumulate + elementwise.
# ----------------------------------------------------------------------------
def _mlp_kernel(x_ref,
                w1_ref, b1_ref,
                w2_ref, b2_ref,
                w3_ref, b3_ref,
                wo_ref, bo_ref,
                hid_ref, pred_ref):
    # Cast x to bf16 in-kernel (mem-bound regime: VPU cast is free).
    x = x_ref[...].astype(jnp.bfloat16)                      # (T, D_in) bf16

    # layer_1 + ReLU                                          (T, 128) f32
    h1 = jnp.dot(x, w1_ref[...], preferred_element_type=jnp.float32) + b1_ref[...]
    h1 = jnp.maximum(h1, 0.0)

    # layer_2 + ReLU -> "hidden"                              (T, 64) f32
    h2 = jnp.dot(h1.astype(jnp.bfloat16), w2_ref[...],
                 preferred_element_type=jnp.float32) + b2_ref[...]
    h2 = jnp.maximum(h2, 0.0)
    hid_ref[...] = h2.astype(hid_ref.dtype)                  # bf16 writeback

    # layer_3 + ReLU                                          (T, 32) f32
    h3 = jnp.dot(h2.astype(jnp.bfloat16), w3_ref[...],
                 preferred_element_type=jnp.float32) + b3_ref[...]
    h3 = jnp.maximum(h3, 0.0)

    # layer_out -> "prediction"                               (T, out) f32
    z = jnp.dot(h3.astype(jnp.bfloat16), wo_ref[...],
                preferred_element_type=jnp.float32) + bo_ref[...]
    pred_ref[...] = z.astype(pred_ref.dtype)

    # TODO(synk): nn.Dropout (identity at inference) and the InstanceNorm1d
    # branch (use_batch_norm=0) are intentionally not emitted.


# ----------------------------------------------------------------------------
# Param packing (do once, outside the per-call forward).
# ----------------------------------------------------------------------------
def pack_params(params, mxu_dtype=jnp.bfloat16):
    """Cast weights to the MXU input dtype; biases stay f32 (f32 VPU math)."""
    return {
        "w1": params["w1"].astype(mxu_dtype), "b1": params["b1"].astype(jnp.float32),
        "w2": params["w2"].astype(mxu_dtype), "b2": params["b2"].astype(jnp.float32),
        "w3": params["w3"].astype(mxu_dtype), "b3": params["b3"].astype(jnp.float32),
        "wo": params["wo"].astype(mxu_dtype), "bo": params["bo"].astype(jnp.float32),
    }


def _pick_batch_tile(B, requested):
    """Multiple of 16; clamp so grid >= 2 when B allows (v7x has 2 TCs)."""
    requested = max(16, (requested // 16) * 16)
    half = -(-B // 2)                    # ceil(B / 2)
    half16 = max(16, -(-half // 16) * 16)
    return min(requested, half16)


# ----------------------------------------------------------------------------
# Forward wrapper.
# ----------------------------------------------------------------------------
def simple_non_linear_forward(x, packed, *, batch_tile=1024):
    """x: (B, input_dim) float32.  packed: output of pack_params()."""
    B, input_dim = x.shape
    out_dim = packed["wo"].shape[1]

    tile = _pick_batch_tile(B, batch_tile)
    grid_b = pl.cdiv(B, tile)
    B_pad = grid_b * tile
    if B_pad != B:
        # Only emitted when B is not tile-divisible.
        x = jnp.pad(x, ((0, B_pad - B), (0, 0)))

    full = lambda a: pl.BlockSpec(a.shape, lambda i: (0, 0))  # VMEM-resident consts

    param_bytes = int(sum(int(a.size) * a.dtype.itemsize for a in packed.values()))
    flops = 2 * B_pad * (input_dim * HID1 + HID1 * HID2 + HID2 * HID3 + HID3 * out_dim)
    bytes_accessed = (B_pad * input_dim * 4      # x read (f32)
                      + B_pad * HID2 * 2         # hidden write (bf16)
                      + B_pad * out_dim * 4      # prediction write (f32)
                      + param_bytes)

    grid_spec = pltpu.PrefetchScalarGridSpec(
        num_scalar_prefetch=0,
        grid=(grid_b,),
        in_specs=[
            pl.BlockSpec((tile, input_dim), lambda i: (i, 0)),   # x tile
            full(packed["w1"]), full(packed["b1"]),
            full(packed["w2"]), full(packed["b2"]),
            full(packed["w3"]), full(packed["b3"]),
            full(packed["wo"]), full(packed["bo"]),
        ],
        out_specs=[
            pl.BlockSpec((tile, HID2), lambda i: (i, 0)),        # hidden
            pl.BlockSpec((tile, out_dim), lambda i: (i, 0)),     # prediction
        ],
    )

    hidden_pad, pred_pad = pl.pallas_call(
        _mlp_kernel,
        out_shape=(jax.ShapeDtypeStruct((B_pad, HID2), jnp.bfloat16),
                   jax.ShapeDtypeStruct((B_pad, out_dim), jnp.float32)),
        grid_spec=grid_spec,
        compiler_params=pltpu.CompilerParams(
            dimension_semantics=("parallel",)),
        cost_estimate=pl.CostEstimate(flops=flops, transcendentals=0,
                                      bytes_accessed=bytes_accessed),
    )(x, packed["w1"], packed["b1"], packed["w2"], packed["b2"],
      packed["w3"], packed["b3"], packed["wo"], packed["bo"])

    hidden = hidden_pad if B_pad == B else hidden_pad[:B]
    prediction = pred_pad if B_pad == B else pred_pad[:B]

    return {"prediction": prediction, "adv_output": None, "hidden": hidden,
            "classifier_hiddens": None, "adv_hiddens": None}


# ----------------------------------------------------------------------------
# Deterministic parameter init (mirrors torch.nn.Linear's U(-1/sqrt(in), 1/sqrt(in)))
# ----------------------------------------------------------------------------
def init_params(key, input_dim, output_dim):
    dims = [(input_dim, HID1), (HID1, HID2), (HID2, HID3), (HID3, output_dim)]
    names = ["1", "2", "3", "o"]
    params = {}
    for (fan_in, fan_out), n in zip(dims, names):
        key, kw, kb = jax.random.split(key, 3)
        bound = 1.0 / jnp.sqrt(fan_in)
        params[f"w{n}"] = jax.random.uniform(
            kw, (fan_in, fan_out), jnp.float32, -bound, bound)
        params[f"b{n}"] = jax.random.uniform(
            kb, (1, fan_out), jnp.float32, -bound, bound)
    return params


# Reference with the same numerics as the kernel (bf16 MXU inputs, f32 accum).
def reference_forward_bf16(x, p):
    bf = jnp.bfloat16
    d = functools.partial(jnp.dot, preferred_element_type=jnp.float32)
    h1 = jnp.maximum(d(x.astype(bf), p["w1"].astype(bf)) + p["b1"], 0.0)
    h2 = jnp.maximum(d(h1.astype(bf), p["w2"].astype(bf)) + p["b2"], 0.0)
    h3 = jnp.maximum(d(h2.astype(bf), p["w3"].astype(bf)) + p["b3"], 0.0)
    z = d(h3.astype(bf), p["wo"].astype(bf)) + p["bo"]
    return z, h2


if __name__ == "__main__":
    input_dim, output_dim, batch = 32, 2, 300   # B not a multiple of the tile

    key = jax.random.PRNGKey(0)
    key, kx = jax.random.split(key)
    x = jax.random.normal(kx, (batch, input_dim), jnp.float32)
    params = init_params(key, input_dim, output_dim)
    packed = pack_params(params)                # one-time packing

    # B=300 -> tile=160, grid=2 (exercises padding + both TCs on v7x).
    out = simple_non_linear_forward(x, packed)
    pred = jax.block_until_ready(out["prediction"])
    hidden = jax.block_until_ready(out["hidden"])

    ref_pred, ref_hidden = reference_forward_bf16(x, params)
    assert pred.shape == (batch, output_dim)
    assert hidden.shape == (batch, HID2)
    assert pred.dtype == jnp.float32
    assert hidden.dtype == jnp.bfloat16
    assert jnp.allclose(pred, ref_pred, atol=3e-3, rtol=3e-3)
    # hidden carries one extra bf16 rounding on writeback.
    assert jnp.allclose(hidden.astype(jnp.float32), ref_hidden, atol=3e-2, rtol=3e-2)

    print("KERNEL_OK")
</pallas_src>

<mosaic_0001>
module attributes {stable_mosaic.version = 11 : i64} {
  func.func @_mlp_kernel(%arg0: i32, %arg1: memref<160x32xf32, #tpu.memory_space<vmem>>, %arg2: memref<32x128xbf16, #tpu.memory_space<vmem>>, %arg3: memref<1x128xf32, #tpu.memory_space<vmem>>, %arg4: memref<128x64xbf16, #tpu.memory_space<vmem>>, %arg5: memref<1x64xf32, #tpu.memory_space<vmem>>, %arg6: memref<64x32xbf16, #tpu.memory_space<vmem>>, %arg7: memref<1x32xf32, #tpu.memory_space<vmem>>, %arg8: memref<32x2xbf16, #tpu.memory_space<vmem>>, %arg9: memref<1x2xf32, #tpu.memory_space<vmem>>, %arg10: memref<160x64xbf16, #tpu.memory_space<vmem>>, %arg11: memref<160x2xf32, #tpu.memory_space<vmem>>) attributes {dimension_semantics = [#tpu.dimension_semantics<parallel>], iteration_bounds = array<i64: 2>, scalar_prefetch = 0 : i64, scratch_operands = 0 : i64, tpu.core_type = #tpu.core_type<tc>, window_params = [{transform_indices = @transform_0, window_bounds = array<i64: 160, 32>}, {pipeline_mode = #tpu.pipeline_mode<synchronous>, transform_indices = @transform_1, window_bounds = array<i64: 32, 128>}, {pipeline_mode = #tpu.pipeline_mode<synchronous>, transform_indices = @transform_2, window_bounds = array<i64: 1, 128>}, {pipeline_mode = #tpu.pipeline_mode<synchronous>, transform_indices = @transform_3, window_bounds = array<i64: 128, 64>}, {pipeline_mode = #tpu.pipeline_mode<synchronous>, transform_indices = @transform_4, window_bounds = array<i64: 1, 64>}, {pipeline_mode = #tpu.pipeline_mode<synchronous>, transform_indices = @transform_5, window_bounds = array<i64: 64, 32>}, {pipeline_mode = #tpu.pipeline_mode<synchronous>, transform_indices = @transform_6, window_bounds = array<i64: 1, 32>}, {pipeline_mode = #tpu.pipeline_mode<synchronous>, transform_indices = @transform_7, window_bounds = array<i64: 32, 2>}, {pipeline_mode = #tpu.pipeline_mode<synchronous>, transform_indices = @transform_8, window_bounds = array<i64: 1, 2>}, {transform_indices = @transform_9, window_bounds = array<i64: 160, 64>}, {transform_indices = @transform_10, window_bounds = array<i64: 160, 2>}]} {
    %c0 = arith.constant 0 : index
    %c0_0 = arith.constant 0 : index
    %0 = vector.load %arg1[%c0, %c0_0] : memref<160x32xf32, #tpu.memory_space<vmem>>, vector<160x32xf32>
    %1 = arith.truncf %0 : vector<160x32xf32> to vector<160x32xbf16>
    %c0_1 = arith.constant 0 : index
    %c0_2 = arith.constant 0 : index
    %2 = vector.load %arg2[%c0_1, %c0_2] : memref<32x128xbf16, #tpu.memory_space<vmem>>, vector<32x128xbf16>
    %cst = arith.constant dense<0.000000e+00> : vector<160x128xf32>
    %3 = tpu.matmul %1, %2, %cst {dimension_numbers = #tpu.dot_dimension_numbers<[1], [0], [0], [1], [0, 0, 1, 1], [], []>} : vector<160x32xbf16>, vector<32x128xbf16>, vector<160x128xf32> -> vector<160x128xf32>
    %c0_3 = arith.constant 0 : index
    %c0_4 = arith.constant 0 : index
    %4 = vector.load %arg3[%c0_3, %c0_4] : memref<1x128xf32, #tpu.memory_space<vmem>>, vector<1x128xf32>
    %5 = vector.broadcast %4 : vector<1x128xf32> to vector<160x128xf32>
    %6 = arith.addf %3, %5 : vector<160x128xf32>
    %cst_5 = arith.constant 0.000000e+00 : f32
    %7 = vector.broadcast %cst_5 : f32 to vector<160x128xf32>
    %8 = arith.maximumf %6, %7 : vector<160x128xf32>
    %9 = arith.truncf %8 : vector<160x128xf32> to vector<160x128xbf16>
    %c0_6 = arith.constant 0 : index
    %c0_7 = arith.constant 0 : index
    %10 = vector.load %arg4[%c0_6, %c0_7] : memref<128x64xbf16, #tpu.memory_space<vmem>>, vector<128x64xbf16>
    %cst_8 = arith.constant dense<0.000000e+00> : vector<160x64xf32>
    %11 = tpu.matmul %9, %10, %cst_8 {dimension_numbers = #tpu.dot_dimension_numbers<[1], [0], [0], [1], [0, 0, 1, 1], [], []>} : vector<160x128xbf16>, vector<128x64xbf16>, vector<160x64xf32> -> vector<160x64xf32>
    %c0_9 = arith.constant 0 : index
    %c0_10 = arith.constant 0 : index
    %12 = vector.load %arg5[%c0_9, %c0_10] : memref<1x64xf32, #tpu.memory_space<vmem>>, vector<1x64xf32>
    %13 = vector.broadcast %12 : vector<1x64xf32> to vector<160x64xf32>
    %14 = arith.addf %11, %13 : vector<160x64xf32>
    %cst_11 = arith.constant 0.000000e+00 : f32
    %15 = vector.broadcast %cst_11 : f32 to vector<160x64xf32>
    %16 = arith.maximumf %14, %15 : vector<160x64xf32>
    %17 = arith.truncf %16 : vector<160x64xf32> to vector<160x64xbf16>
    %c0_12 = arith.constant 0 : index
    %c0_13 = arith.constant 0 : index
    %18 = vector.load %arg10[%c0_12, %c0_13] : memref<160x64xbf16, #tpu.memory_space<vmem>>, vector<160x64xbf16>
    tpu.vector_store %arg10[%c0_12, %c0_13], %17 {strides = array<i32>} : memref<160x64xbf16, #tpu.memory_space<vmem>>, vector<160x64xbf16>,
    %19 = arith.truncf %16 : vector<160x64xf32> to vector<160x64xbf16>
    %c0_14 = arith.constant 0 : index
    %c0_15 = arith.constant 0 : index
    %20 = vector.load %arg6[%c0_14, %c0_15] : memref<64x32xbf16, #tpu.memory_space<vmem>>, vector<64x32xbf16>
    %cst_16 = arith.constant dense<0.000000e+00> : vector<160x32xf32>
    %21 = tpu.matmul %19, %20, %cst_16 {dimension_numbers = #tpu.dot_dimension_numbers<[1], [0], [0], [1], [0, 0, 1, 1], [], []>} : vector<160x64xbf16>, vector<64x32xbf16>, vector<160x32xf32> -> vector<160x32xf32>
    %c0_17 = arith.constant 0 : index
    %c0_18 = arith.constant 0 : index
    %22 = vector.load %arg7[%c0_17, %c0_18] : memref<1x32xf32, #tpu.memory_space<vmem>>, vector<1x32xf32>
    %23 = vector.broadcast %22 : vector<1x32xf32> to vector<160x32xf32>
    %24 = arith.addf %21, %23 : vector<160x32xf32>
    %cst_19 = arith.constant 0.000000e+00 : f32
    %25 = vector.broadcast %cst_19 : f32 to vector<160x32xf32>
    %26 = arith.maximumf %24, %25 : vector<160x32xf32>
    %27 = arith.truncf %26 : vector<160x32xf32> to vector<160x32xbf16>
    %c0_20 = arith.constant 0 : index
    %c0_21 = arith.constant 0 : index
    %28 = vector.load %arg8[%c0_20, %c0_21] : memref<32x2xbf16, #tpu.memory_space<vmem>>, vector<32x2xbf16>
    %cst_22 = arith.constant dense<0.000000e+00> : vector<160x2xf32>
    %29 = tpu.matmul %27, %28, %cst_22 {dimension_numbers = #tpu.dot_dimension_numbers<[1], [0], [0], [1], [0, 0, 1, 1], [], []>} : vector<160x32xbf16>, vector<32x2xbf16>, vector<160x2xf32> -> vector<160x2xf32>
    %c0_23 = arith.constant 0 : index
    %c0_24 = arith.constant 0 : index
    %30 = vector.load %arg9[%c0_23, %c0_24] : memref<1x2xf32, #tpu.memory_space<vmem>>, vector<1x2xf32>
    %31 = vector.broadcast %30 : vector<1x2xf32> to vector<160x2xf32>
    %32 = arith.addf %29, %31 : vector<160x2xf32>
    %c0_25 = arith.constant 0 : index
    %c0_26 = arith.constant 0 : index
    %33 = vector.load %arg11[%c0_25, %c0_26] : memref<160x2xf32, #tpu.memory_space<vmem>>, vector<160x2xf32>
    tpu.vector_store %arg11[%c0_25, %c0_26], %32 {strides = array<i32>} : memref<160x2xf32, #tpu.memory_space<vmem>>, vector<160x2xf32>,
    return
  }
  func.func @transform_0(%arg0: i32) -> (i32, i32) {
    %c0_i32 = arith.constant 0 : i32
    %c0_i32_0 = arith.constant 0 : i32
    return %arg0, %c0_i32 : i32, i32
  }
  func.func @transform_1(%arg0: i32) -> (i32, i32) {
    %c0_i32 = arith.constant 0 : i32
    %c0_i32_0 = arith.constant 0 : i32
    %c0_i32_1 = arith.constant 0 : i32
    return %c0_i32, %c0_i32_0 : i32, i32
  }
  func.func @transform_2(%arg0: i32) -> (i32, i32) {
    %c0_i32 = arith.constant 0 : i32
    %c0_i32_0 = arith.constant 0 : i32
    %c0_i32_1 = arith.constant 0 : i32
    return %c0_i32, %c0_i32_0 : i32, i32
  }
  func.func @transform_3(%arg0: i32) -> (i32, i32) {
    %c0_i32 = arith.constant 0 : i32
    %c0_i32_0 = arith.constant 0 : i32
    %c0_i32_1 = arith.constant 0 : i32
    return %c0_i32, %c0_i32_0 : i32, i32
  }
  func.func @transform_4(%arg0: i32) -> (i32, i32) {
    %c0_i32 = arith.constant 0 : i32
    %c0_i32_0 = arith.constant 0 : i32
    %c0_i32_1 = arith.constant 0 : i32
    return %c0_i32, %c0_i32_0 : i32, i32
  }
  func.func @transform_5(%arg0: i32) -> (i32, i32) {
    %c0_i32 = arith.constant 0 : i32
    %c0_i32_0 = arith.constant 0 : i32
    %c0_i32_1 = arith.constant 0 : i32
    return %c0_i32, %c0_i32_0 : i32, i32
  }
  func.func @transform_6(%arg0: i32) -> (i32, i32) {
    %c0_i32 = arith.constant 0 : i32
    %c0_i32_0 = arith.constant 0 : i32
    %c0_i32_1 = arith.constant 0 : i32
    return %c0_i32, %c0_i32_0 : i32, i32
  }
  func.func @transform_7(%arg0: i32) -> (i32, i32) {
    %c0_i32 = arith.constant 0 : i32
    %c0_i32_0 = arith.constant 0 : i32
    %c0_i32_1 = arith.constant 0 : i32
    return %c0_i32, %c0_i32_0 : i32, i32
  }
  func.func @transform_8(%arg0: i32) -> (i32, i32) {
    %c0_i32 = arith.constant 0 : i32
    %c0_i32_0 = arith.constant 0 : i32
    %c0_i32_1 = arith.constant 0 : i32
    return %c0_i32, %c0_i32_0 : i32, i32
  }
  func.func @transform_9(%arg0: i32) -> (i32, i32) {
    %c0_i32 = arith.constant 0 : i32
    %c0_i32_0 = arith.constant 0 : i32
    return %arg0, %c0_i32 : i32, i32
  }
  func.func @transform_10(%arg0: i32) -> (i32, i32) {
    %c0_i32 = arith.constant 0 : i32
    %c0_i32_0 = arith.constant 0 : i32
    return %arg0, %c0_i32 : i32, i32
  }
}

</mosaic_0001>

<llo_original>
// kernel: tpu_custom_call.1
$region0: #{tpu_custom_call.1}
  #allocation0 [shape = 'u32[]', space=smem, size = 0x4, offset = 0x4, fixed_abs, tag = 'smem constant byte address 0x4 - core index']
  #allocation1 [shape = 'u32[144,128]{1,0:T(1,128)}', space=vmem, size = 0x12000, scoped, tag = 'internal scratch']
  %s0 = inlined_call_operand.vmem [shape: f32[320,32], index: 0, kind: input, shape index: {}]
  %s1 = inlined_call_operand.vmem [shape: bf16[32,128], index: 1, kind: input, shape index: {}]
  %s2 = inlined_call_operand.vmem [shape: f32[1,128], index: 2, kind: input, shape index: {}]
  %s3 = inlined_call_operand.vmem [shape: bf16[128,64], index: 3, kind: input, shape index: {}]
  %s4 = inlined_call_operand.vmem [shape: f32[1,64], index: 4, kind: input, shape index: {}]
  %s5 = inlined_call_operand.vmem [shape: bf16[64,32], index: 5, kind: input, shape index: {}]
  %s6 = inlined_call_operand.vmem [shape: f32[1,32], index: 6, kind: input, shape index: {}]
  %s7 = inlined_call_operand.vmem [shape: bf16[32,2], index: 7, kind: input, shape index: {}]
  %s8 = inlined_call_operand.vmem [shape: f32[1,2], index: 8, kind: input, shape index: {}]
  %s9 = inlined_call_operand.vmem [shape: bf16[320,64], index: 9, kind: output, shape index: {0}]
  %s10 = inlined_call_operand.vmem [shape: f32[320,2], index: 10, kind: output, shape index: {1}]
  %11 = xla_tuple %s9, %s10
  %s12 = sld [smem:[#allocation0]]
  $region77: #{tpu_custom_call.1} parent=0
    _
  %s14 = ssub.s32 1, %s12
  %s15 = scalar_select 0, %s14, %s12
  loop: start=0, step=1, limit=4
  $region2: #{tpu_custom_call.1} parent=0 // loop_pre_header
    _
  $region3: #{tpu_custom_call.1} parent=0 // loop_header
    %s17 = sphi 0, %s21
    %p18 = scmp.ge.s32.totalorder %s17, 4
    %s27 = sphi 0, %s29
    %s30 = sphi 0, %s27
    %s31 = sphi 0, %s30
    %s47 = sphi 0, %s31
    %s51 = sphi 0, %s51
    %s53 = sphi 0, %s51
    %s54 = sphi 0, %s53
    %s68 = sphi 0, %s54
    %s72 = sphi 0, %s72
    %s74 = sphi 0, %s72
    %s75 = sphi 0, %s74
    %s89 = sphi 0, %s75
    %s93 = sphi 0, %s93
    %s95 = sphi 0, %s93
    %s96 = sphi 0, %s95
    %s110 = sphi 0, %s96
    %s114 = sphi 0, %s114
    %s116 = sphi 0, %s114
    %s117 = sphi 0, %s116
    %s131 = sphi 0, %s117
    %s135 = sphi 0, %s135
    %s137 = sphi 0, %s135
    %s138 = sphi 0, %s137
    %s152 = sphi 0, %s138
    %s156 = sphi 0, %s156
    %s158 = sphi 0, %s156
    %s159 = sphi 0, %s158
    %s173 = sphi 0, %s159
    %s177 = sphi 0, %s177
    %s179 = sphi 0, %s177
    %s180 = sphi 0, %s179
    %s194 = sphi 0, %s180
    %s198 = sphi 0, %s198
    %s200 = sphi 0, %s198
    %s201 = sphi 0, %s200
    %s215 = sphi 0, %s201
    %s221 = sphi 0, %s223
    %s224 = sphi 0, %s221
    %s225 = sphi 0, %s224
    %s241 = sphi 0, %s225
    %s247 = sphi 0, %s249
    %s250 = sphi 0, %s247
    %s251 = sphi 0, %s250
    %s267 = sphi 0, %s251
  $region4: #{tpu_custom_call.1} parent=0 // loop_header_branch
    %20 = sbr.rel (%p18) target = $region8
  $region5: #{tpu_custom_call.1} parent=0 // loop_body
    %s22 = ssub.s32 %s17, 1
    %s23 = ssub.s32 %s17, 2
    %s24 = sadd.s32 %s17, 1
    %s25 = ssub.s32 %s17, %s24
    %p26 = scmp.eq.s32.totalorder %s25, 0
    %s28 = sadd.s32 %s27, 1
    %s29 = scalar_select %p26, %s27, %s28
    %p32 = pneg %p26
    %p33 = scmp.eq.s32.totalorder %s17, 1
    %p34 = por %p32, %p33
    %p35 = scmp.ne.s32.totalorder %s27, %s30
    %p36 = scmp.eq.s32.totalorder %s17, 0
    %p37 = por %p35, %p36
    %p38 = scmp.ne.s32.totalorder %s27, %s30
    %p39 = scmp.eq.s32.totalorder %s22, 1
    %p40 = por %p38, %p39
    %p41 = scmp.ne.s32.totalorder %s30, %s31
    %p42 = scmp.eq.s32.totalorder %s22, 0
    %p43 = por %p41, %p42
    %p44 = scmp.ne.s32.totalorder %s30, %s31
    %p45 = scmp.eq.s32.totalorder %s23, 1
    %p46 = por %p44, %p45
    %p48 = scmp.ne.s32.totalorder %s31, %s47
    %p49 = scmp.eq.s32.totalorder %s23, 0
    %p50 = por %p48, %p49
    %s52 = sadd.s32 %s51, 1
    %p55 = scmp.eq.s32.totalorder %s17, 1
    %p56 = scmp.ne.s32.totalorder %s51, %s53
    %p57 = scmp.eq.s32.totalorder %s17, 0
    %p58 = por %p56, %p57
    %p59 = scmp.ne.s32.totalorder %s51, %s53
    %p60 = scmp.eq.s32.totalorder %s22, 1
    %p61 = por %p59, %p60
    %p62 = scmp.ne.s32.totalorder %s53, %s54
    %p63 = scmp.eq.s32.totalorder %s22, 0
    %p64 = por %p62, %p63
    %p65 = scmp.ne.s32.totalorder %s53, %s54
    %p66 = scmp.eq.s32.totalorder %s23, 1
    %p67 = por %p65, %p66
    %p69 = scmp.ne.s32.totalorder %s54, %s68
    %p70 = scmp.eq.s32.totalorder %s23, 0
    %p71 = por %p69, %p70
    %s73 = sadd.s32 %s72, 1
    %p76 = scmp.eq.s32.totalorder %s17, 1
    %p77 = scmp.ne.s32.totalorder %s72, %s74
    %p78 = scmp.eq.s32.totalorder %s17, 0
    %p79 = por %p77, %p78
    %p80 = scmp.ne.s32.totalorder %s72, %s74
    %p81 = scmp.eq.s32.totalorder %s22, 1
    %p82 = por %p80, %p81
    %p83 = scmp.ne.s32.totalorder %s74, %s75
    %p84 = scmp.eq.s32.totalorder %s22, 0
    %p85 = por %p83, %p84
    %p86 = scmp.ne.s32.totalorder %s74, %s75
    %p87 = scmp.eq.s32.totalorder %s23, 1
    %p88 = por %p86, %p87
    %p90 = scmp.ne.s32.totalorder %s75, %s89
    %p91 = scmp.eq.s32.totalorder %s23, 0
    %p92 = por %p90, %p91
    %s94 = sadd.s32 %s93, 1
    %p97 = scmp.eq.s32.totalorder %s17, 1
    %p98 = scmp.ne.s32.totalorder %s93, %s95
    %p99 = scmp.eq.s32.totalorder %s17, 0
    %p100 = por %p98, %p99
    %p101 = scmp.ne.s32.totalorder %s93, %s95
    %p102 = scmp.eq.s32.totalorder %s22, 1
    %p103 = por %p101, %p102
    %p104 = scmp.ne.s32.totalorder %s95, %s96
    %p105 = scmp.eq.s32.totalorder %s22, 0
    %p106 = por %p104, %p105
    %p107 = scmp.ne.s32.totalorder %s95, %s96
    %p108 = scmp.eq.s32.totalorder %s23, 1
    %p109 = por %p107, %p108
    %p111 = scmp.ne.s32.totalorder %s96, %s110
    %p112 = scmp.eq.s32.totalorder %s23, 0
    %p113 = por %p111, %p112
    %s115 = sadd.s32 %s114, 1
    %p118 = scmp.eq.s32.totalorder %s17, 1
    %p119 = scmp.ne.s32.totalorder %s114, %s116
    %p120 = scmp.eq.s32.totalorder %s17, 0
    %p121 = por %p119, %p120
    %p122 = scmp.ne.s32.totalorder %s114, %s116
    %p123 = scmp.eq.s32.totalorder %s22, 1
    %p124 = por %p122, %p123
    %p125 = scmp.ne.s32.totalorder %s116, %s117
    %p126 = scmp.eq.s32.totalorder %s22, 0
    %p127 = por %p125, %p126
    %p128 = scmp.ne.s32.totalorder %s116, %s117
    %p129 = scmp.eq.s32.totalorder %s23, 1
    %p130 = por %p128, %p129
    %p132 = scmp.ne.s32.totalorder %s117, %s131
    %p133 = scmp.eq.s32.totalorder %s23, 0
    %p134 = por %p132, %p133
    %s136 = sadd.s32 %s135, 1
    %p139 = scmp.eq.s32.totalorder %s17, 1
    %p140 = scmp.ne.s32.totalorder %s135, %s137
    %p141 = scmp.eq.s32.totalorder %s17, 0
    %p142 = por %p140, %p141
    %p143 = scmp.ne.s32.totalorder %s135, %s137
    %p144 = scmp.eq.s32.totalorder %s22, 1
    %p145 = por %p143, %p144
    %p146 = scmp.ne.s32.totalorder %s137, %s138
    %p147 = scmp.eq.s32.totalorder %s22, 0
    %p148 = por %p146, %p147
    %p149 = scmp.ne.s32.totalorder %s137, %s138
    %p150 = scmp.eq.s32.totalorder %s23, 1
    %p151 = por %p149, %p150
    %p153 = scmp.ne.s32.totalorder %s138, %s152
    %p154 = scmp.eq.s32.totalorder %s23, 0
    %p155 = por %p153, %p154
    %s157 = sadd.s32 %s156, 1
    %p160 = scmp.eq.s32.totalorder %s17, 1
    %p161 = scmp.ne.s32.totalorder %s156, %s158
    %p162 = scmp.eq.s32.totalorder %s17, 0
    %p163 = por %p161, %p162
    %p164 = scmp.ne.s32.totalorder %s156, %s158
    %p165 = scmp.eq.s32.totalorder %s22, 1
    %p166 = por %p164, %p165
    %p167 = scmp.ne.s32.totalorder %s158, %s159
    %p168 = scmp.eq.s32.totalorder %s22, 0
    %p169 = por %p167, %p168
    %p170 = scmp.ne.s32.totalorder %s158, %s159
    %p171 = scmp.eq.s32.totalorder %s23, 1
    %p172 = por %p170, %p171
    %p174 = scmp.ne.s32.totalorder %s159, %s173
    %p175 = scmp.eq.s32.totalorder %s23, 0
    %p176 = por %p174, %p175
    %s178 = sadd.s32 %s177, 1
    %p181 = scmp.eq.s32.totalorder %s17, 1
    %p182 = scmp.ne.s32.totalorder %s177, %s179
    %p183 = scmp.eq.s32.totalorder %s17, 0
    %p184 = por %p182, %p183
    %p185 = scmp.ne.s32.totalorder %s177, %s179
    %p186 = scmp.eq.s32.totalorder %s22, 1
    %p187 = por %p185, %p186
    %p188 = scmp.ne.s32.totalorder %s179, %s180
    %p189 = scmp.eq.s32.totalorder %s22, 0
    %p190 = por %p188, %p189
    %p191 = scmp.ne.s32.totalorder %s179, %s180
    %p192 = scmp.eq.s32.totalorder %s23, 1
    %p193 = por %p191, %p192
    %p195 = scmp.ne.s32.totalorder %s180, %s194
    %p196 = scmp.eq.s32.totalorder %s23, 0
    %p197 = por %p195, %p196
    %s199 = sadd.s32 %s198, 1
    %p202 = scmp.eq.s32.totalorder %s17, 1
    %p203 = scmp.ne.s32.totalorder %s198, %s200
    %p204 = scmp.eq.s32.totalorder %s17, 0
    %p205 = por %p203, %p204
    %p206 = scmp.ne.s32.totalorder %s198, %s200
    %p207 = scmp.eq.s32.totalorder %s22, 1
    %p208 = por %p206, %p207
    %p209 = scmp.ne.s32.totalorder %s200, %s201
    %p210 = scmp.eq.s32.totalorder %s22, 0
    %p211 = por %p209, %p210
    %p212 = scmp.ne.s32.totalorder %s200, %s201
    %p213 = scmp.eq.s32.totalorder %s23, 1
    %p214 = por %p212, %p213
    %p216 = scmp.ne.s32.totalorder %s201, %s215
    %p217 = scmp.eq.s32.totalorder %s23, 0
    %p218 = por %p216, %p217
    %s219 = ssub.s32 %s17, %s24
    %p220 = scmp.eq.s32.totalorder %s219, 0
    %s222 = sadd.s32 %s221, 1
    %s223 = scalar_select %p220, %s221, %s222
    %p226 = pneg %p220
    %p227 = scmp.eq.s32.totalorder %s17, 1
    %p228 = por %p226, %p227
    %p229 = scmp.ne.s32.totalorder %s221, %s224
    %p230 = scmp.eq.s32.totalorder %s17, 0
    %p231 = por %p229, %p230
    %p232 = scmp.ne.s32.totalorder %s221, %s224
    %p233 = scmp.eq.s32.totalorder %s22, 1
    %p234 = por %p232, %p233
    %p235 = scmp.ne.s32.totalorder %s224, %s225
    %p236 = scmp.eq.s32.totalorder %s22, 0
    %p237 = por %p235, %p236
    %p238 = scmp.ne.s32.totalorder %s224, %s225
    %p239 = scmp.eq.s32.totalorder %s23, 1
    %p240 = por %p238, %p239
    %p242 = scmp.ne.s32.totalorder %s225, %s241
    %p243 = scmp.eq.s32.totalorder %s23, 0
    %p244 = por %p242, %p243
    %s245 = ssub.s32 %s17, %s24
    %p246 = scmp.eq.s32.totalorder %s245, 0
    %s248 = sadd.s32 %s247, 1
    %s249 = scalar_select %p246, %s247, %s248
    %p252 = pneg %p246
    %p253 = scmp.eq.s32.totalorder %s17, 1
    %p254 = por %p252, %p253
    %p255 = scmp.ne.s32.totalorder %s247, %s250
    %p256 = scmp.eq.s32.totalorder %s17, 0
    %p257 = por %p255, %p256
    %p258 = scmp.ne.s32.totalorder %s247, %s250
    %p259 = scmp.eq.s32.totalorder %s22, 1
    %p260 = por %p258, %p259
    %p261 = scmp.ne.s32.totalorder %s250, %s251
    %p262 = scmp.eq.s32.totalorder %s22, 0
    %p263 = por %p261, %p262
    %p264 = scmp.ne.s32.totalorder %s250, %s251
    %p265 = scmp.eq.s32.totalorder %s23, 1
    %p266 = por %p264, %p265
    %p268 = scmp.ne.s32.totalorder %s251, %s267
    %p269 = scmp.eq.s32.totalorder %s23, 0
    %p270 = por %p268, %p269
    %p271 = scmp.le.s32.totalorder 1, %s17
    %p272 = scmp.lt.s32.totalorder %s17, 3
    %p273 = pnand %p271, %p272
    %p274 = pneg %p273
    // Predicated region
    $region9: #{tpu_custom_call.1} parent=5 // pred_check
      _
    $region10: #{tpu_custom_call.1} parent=5 // pred_check_branch
      %276 = sbr.rel (%p273) target = $region12
    $region11: #{tpu_custom_call.1} parent=5 // pred_region
      %s277 = ssub.s32 %s17, 1
      // Predicated region
      $region13: #{tpu_custom_call.1} parent=11 // pred_check
        %p278 = pneg %p64
      $region14: #{tpu_custom_call.1} parent=11 // pred_check_branch
        %280 = sbr.rel (%p278) target = $region16
      $region15: #{tpu_custom_call.1} parent=11 // pred_region
        _
      $region16: #{tpu_custom_call.1} parent=11 // pred_fallthru
        _
      // Predicated region
      $region17: #{tpu_custom_call.1} parent=11 // pred_check
        %p281 = pneg %p85
      $region18: #{tpu_custom_call.1} parent=11 // pred_check_branch
        %283 = sbr.rel (%p281) target = $region20
      $region19: #{tpu_custom_call.1} parent=11 // pred_region
        _
      $region20: #{tpu_custom_call.1} parent=11 // pred_fallthru
        _
      // Predicated region
      $region21: #{tpu_custom_call.1} parent=11 // pred_check
        %p284 = pneg %p106
      $region22: #{tpu_custom_call.1} parent=11 // pred_check_branch
        %286 = sbr.rel (%p284) target = $region24
      $region23: #{tpu_custom_call.1} parent=11 // pred_region
        _
      $region24: #{tpu_custom_call.1} parent=11 // pred_fallthru
        _
      // Predicated region
      $region25: #{tpu_custom_call.1} parent=11 // pred_check
        %p287 = pneg %p127
      $region26: #{tpu_custom_call.1} parent=11 // pred_check_branch
        %289 = sbr.rel (%p287) target = $region28
      $region27: #{tpu_custom_call.1} parent=11 // pred_region
        _
      $region28: #{tpu_custom_call.1} parent=11 // pred_fallthru
        _
      // Predicated region
      $region29: #{tpu_custom_call.1} parent=11 // pred_check
        %p290 = pneg %p148
      $region30: #{tpu_custom_call.1} parent=11 // pred_check_branch
        %292 = sbr.rel (%p290) target = $region32
      $region31: #{tpu_custom_call.1} parent=11 // pred_region
        _
      $region32: #{tpu_custom_call.1} parent=11 // pred_fallthru
        _
      // Predicated region
      $region33: #{tpu_custom_call.1} parent=11 // pred_check
        %p293 = pneg %p169
      $region34: #{tpu_custom_call.1} parent=11 // pred_check_branch
        %295 = sbr.rel (%p293) target = $region36
      $region35: #{tpu_custom_call.1} parent=11 // pred_region
        _
      $region36: #{tpu_custom_call.1} parent=11 // pred_fallthru
        _
      // Predicated region
      $region37: #{tpu_custom_call.1} parent=11 // pred_check
        %p296 = pneg %p190
      $region38: #{tpu_custom_call.1} parent=11 // pred_check_branch
        %298 = sbr.rel (%p296) target = $region40
      $region39: #{tpu_custom_call.1} parent=11 // pred_region
        _
      $region40: #{tpu_custom_call.1} parent=11 // pred_fallthru
        _
      // Predicated region
      $region41: #{tpu_custom_call.1} parent=11 // pred_check
        %p299 = pneg %p211
      $region42: #{tpu_custom_call.1} parent=11 // pred_check_branch
        %301 = sbr.rel (%p299) target = $region44
      $region43: #{tpu_custom_call.1} parent=11 // pred_region
        _
      $region44: #{tpu_custom_call.1} parent=11 // pred_fallthru
        _
    $region12: #{tpu_custom_call.1} parent=5 // pred_fallthru
      _
    %p302 = scmp.lt.s32.totalorder %s17, 2
    // Predicated region
    $region45: #{tpu_custom_call.1} parent=5 // pred_check
      %p303 = pneg %p302
    $region46: #{tpu_custom_call.1} parent=5 // pred_check_branch
      %305 = sbr.rel (%p303) target = $region48
    $region47: #{tpu_custom_call.1} parent=5 // pred_region
      // Predicated region
      $region49: #{tpu_custom_call.1} parent=47 // pred_check
        %p306 = pneg %p37
      $region50: #{tpu_custom_call.1} parent=47 // pred_check_branch
        %308 = sbr.rel (%p306) target = $region52
      $region51: #{tpu_custom_call.1} parent=47 // pred_region
        %s309 = smul.u32 20, %s17
        %p310 = scmp.lt.s32.totalorder %s309, 39
        %s311 = scalar_select %p310, %s309, 39
        %s312 = smul.addr %s311, 8
        %s313 = scalar_lea.vmem %s0, %s312
        %s314 = smul.u32 20, %s17
      $region52: #{tpu_custom_call.1} parent=47 // pred_fallthru
        _
    $region48: #{tpu_custom_call.1} parent=5 // pred_fallthru
      _
    %p315 = scmp.le.s32.totalorder 1, %s17
    %p316 = scmp.lt.s32.totalorder %s17, 3
    %p317 = pnand %p315, %p316
    %p318 = pneg %p317
    // Predicated region
    $region53: #{tpu_custom_call.1} parent=5 // pred_check
      _
    $region54: #{tpu_custom_call.1} parent=5 // pred_check_branch
      %320 = sbr.rel (%p317) target = $region56
    $region55: #{tpu_custom_call.1} parent=5 // pred_region
      %s321 = ssub.s32 %s17, 1
      %s322 = smul.u32 20, %s22
      %p323 = scmp.lt.s32.totalorder %s322, 39
      %s324 = scalar_select %p323, %s322, 39
      %s325 = smul.addr %s324, 8
      %s326 = scalar_lea.vmem %s0, %s325
      %p327 = pneg %p43
      %p328 = pneg %p40
      %p329 = pneg %p64
      %p330 = pneg %p61
      %p331 = pneg %p85
      %p332 = pneg %p82
      %p333 = pneg %p106
      %p334 = pneg %p103
      %p335 = pneg %p127
      %p336 = pneg %p124
      %p337 = pneg %p148
      %p338 = pneg %p145
      %p339 = pneg %p169
      %p340 = pneg %p166
      %p341 = pneg %p190
      %p342 = pneg %p187
      %p343 = pneg %p211
      %p344 = pneg %p208
      %p345 = pneg %p237
      %p346 = pneg %p234
      %s347 = smul.u32 20, %s22
      %p348 = scmp.lt.s32.totalorder %s347, 39
      %s349 = scalar_select %p348, %s347, 39
      %s350 = smul.addr %s349, 4
      %s351 = scalar_lea.vmem %s9, %s350
      %p352 = pneg %p263
      %p353 = pneg %p260
      %s354 = smul.u32 20, %s22
      %p355 = scmp.lt.s32.totalorder %s354, 39
      %s356 = scalar_select %p355, %s354, 39
      %s357 = smul.addr %s356, 8
      %s358 = scalar_lea.vmem %s10, %s357
      %s359 = smul.u32 20, %s22
      %p360 = scmp.lt.s32.totalorder %s359, 39
      %s361 = scalar_select %p360, %s359, 39
      %s362 = smul.addr %s361, 8
      %s363 = scalar_lea.vmem %s0, %s362
      %s364 = smul.u32 20, %s22
      %s365 = smul.u32 20, %s22
      %p366 = scmp.lt.s32.totalorder %s365, 39
      %s367 = scalar_select %p366, %s365, 39
      %s368 = smul.addr %s367, 4
      %s369 = scalar_lea.vmem %s9, %s368
      %s370 = smul.u32 20, %s22
      %s371 = smul.u32 20, %s22
      %p372 = scmp.lt.s32.totalorder %s371, 39
      %s373 = scalar_select %p372, %s371, 39
      %s374 = smul.addr %s373, 8
      %s375 = scalar_lea.vmem %s10, %s374
      %s376 = smul.u32 20, %s22
      %v378 = vld [vmem:[%s363] sm:$0xff]
      %v379 = vld [vmem:[%s363 + $0x8] sm:$0xff]
      %v380 = vld [vmem:[%s363 + $0x10] sm:$0xff]
      %v381 = vld [vmem:[%s363 + $0x18] sm:$0xff]
      %v382 = vld [vmem:[%s363 + $0x20] sm:$0xff]
      %v383 = vld [vmem:[%s363 + $0x28] sm:$0xff]
      %v384 = vld [vmem:[%s363 + $0x30] sm:$0xff]
      %v385 = vld [vmem:[%s363 + $0x38] sm:$0xff]
      %v386 = vld [vmem:[%s363 + $0x40] sm:$0xff]
      %v387 = vld [vmem:[%s363 + $0x48] sm:$0xff]
      %v388 = vld [vmem:[%s363 + $0x50] sm:$0xff]
      %v389 = vld [vmem:[%s363 + $0x58] sm:$0xff]
      %v390 = vld [vmem:[%s363 + $0x60] sm:$0xff]
      %v391 = vld [vmem:[%s363 + $0x68] sm:$0xff]
      %v392 = vld [vmem:[%s363 + $0x70] sm:$0xff]
      %v393 = vld [vmem:[%s363 + $0x78] sm:$0xff]
      %v394 = vld [vmem:[%s363 + $0x80] sm:$0xff]
      %v395 = vld [vmem:[%s363 + $0x88] sm:$0xff]
      %v396 = vld [vmem:[%s363 + $0x90] sm:$0xff]
      %v397 = vld [vmem:[%s363 + $0x98] sm:$0xff]
      %v398 = vpack.c.bf16 %v379, %v378
      %v399 = vpack.c.bf16 %v381, %v380
      %v400 = vpack.c.bf16 %v383, %v382
      %v401 = vpack.c.bf16 %v385, %v384
      %v402 = vpack.c.bf16 %v387, %v386
      %v403 = vpack.c.bf16 %v389, %v388
      %v404 = vpack.c.bf16 %v391, %v390
      %v405 = vpack.c.bf16 %v393, %v392
      %v406 = vpack.c.bf16 %v395, %v394
      %v407 = vpack.c.bf16 %v397, %v396
      %v408 = vld [vmem:[%s1] sm:$0xf]
      %v409 = vld [vmem:[%s1 + $0x4] sm:$0xf]
      %v410 = vld [vmem:[%s1 + $0x8] sm:$0xf]
      %v411 = vld [vmem:[%s1 + $0xc] sm:$0xf]
      %v412 = vld [vmem:[%s2] sm:$0x1]
      %v414 = vlaneseq
      %v415 = vshrl.u32 %v414, 7
      %v416 = vsub.s32 0, %v415
      %v417 = vrot.slane %v412, %v416
      %v423 = vunpack.c.l.b16 %v408
      %v424 = vunpack.c.l.b16 %v409
      %v425 = vunpack.c.l.b16 %v410
      %v426 = vunpack.c.l.b16 %v411
      %v427 = vpack.c.b16 %v424, %v423
      %v428 = vpack.c.b16 %v426, %v425
      %vm431 = vcmask 261120
      %v433 = vsel %vm431, %v398, 0
      %v436 = vsel %vm431, %v399, 0
      %v439 = vsel %vm431, %v400, 0
      %v442 = vsel %vm431, %v401, 0
      %v445 = vsel %vm431, %v402, 0
      %v448 = vsel %vm431, %v403, 0
      %v451 = vsel %vm431, %v404, 0
      %v454 = vsel %vm431, %v405, 0
      %v457 = vsel %vm431, %v406, 0
      %v460 = vsel %vm431, %v407, 0
      %462 = vmatprep.subr.bf16.mxu0 0
      %463 = vmatpush1.bf16.msra.mxu0 0
      %464 = vmatprep.subr.bf16.mxu0 0
      %465 = vmatpush1.bf16.msra.mxu0 0
      %466 = vmatprep.subr.bf16.mxu0 0
      %467 = vmatpush1.bf16.msra.mxu0 0
      %468 = vmatprep.subr.bf16.mxu0 0
      %469 = vmatpush1.bf16.msra.mxu0 0
      %470 = vmatprep.subr.bf16.mxu0 0
      %471 = vmatpush1.bf16.msra.mxu0 0
      %472 = vmatprep.subr.bf16.mxu0 0
      %473 = vmatpush1.bf16.msra.mxu0 0
      %474 = vmatprep.subr.bf16.mxu0 0
      %475 = vmatpush1.bf16.msra.mxu0 %v428
      %476 = vmatprep.subr.bf16.mxu0 0
      %477 = vmatpush1.bf16.msra.mxu0 %v427
      %478 = vmatprep.subr.bf16.mxu0 0
      %479 = vmatpush2.bf16.msra.mxu0 0
      %480 = vmatprep.subr.bf16.mxu0 0
      %481 = vmatpush2.bf16.msra.mxu0 0
      %482 = vmatprep.subr.bf16.mxu0 0
      %483 = vmatpush2.bf16.msra.mxu0 0
      %484 = vmatprep.subr.bf16.mxu0 0
      %485 = vmatpush2.bf16.msra.mxu0 0
      %486 = vmatprep.subr.bf16.mxu0 0
      %487 = vmatpush2.bf16.msra.mxu0 0
      %488 = vmatprep.subr.bf16.mxu0 0
      %489 = vmatpush2.bf16.msra.mxu0 0
      %490 = vmatprep.subr.bf16.mxu0 0
      %491 = vmatpush2.bf16.msra.mxu0 0
      %492 = vmatprep.subr.bf16.mxu0 0
      %493 = vmatpush2.bf16.msra.mxu0 0
      %494 = vmatprep.mubr.bf16.mxu0 0
      %495 = vmatmul.mubr.bf16.gmra.mxu0 %v433
      %v496 = vpop.f32.mrf.mxu0
      %v497 = vadd.f32 %v417, %v496
      %v498 = vpop.f32.mrf.mxu0
      %v499 = vpop.f32.mrf.mxu0
      %v500 = vadd.f32 %v417, %v499
      %v501 = vpop.f32.mrf.mxu0
      %502 = vmatprep.mubr.bf16.mxu0 0
      %503 = vmatmul.mubr.bf16.gmra.mxu0 %v436
      %v504 = vpop.f32.mrf.mxu0
      %v505 = vadd.f32 %v417, %v504
      %v506 = vpop.f32.mrf.mxu0
      %v507 = vpop.f32.mrf.mxu0
      %v508 = vadd.f32 %v417, %v507
      %v509 = vpop.f32.mrf.mxu0
      %510 = vmatprep.mubr.bf16.mxu0 0
      %511 = vmatmul.mubr.bf16.gmra.mxu0 %v439
      %v512 = vpop.f32.mrf.mxu0
      %v513 = vadd.f32 %v417, %v512
      %v514 = vpop.f32.mrf.mxu0
      %v515 = vpop.f32.mrf.mxu0
      %v516 = vadd.f32 %v417, %v515
      %v517 = vpop.f32.mrf.mxu0
      %518 = vmatprep.mubr.bf16.mxu0 0
      %519 = vmatmul.mubr.bf16.gmra.mxu0 %v442
      %v520 = vpop.f32.mrf.mxu0
      %v521 = vadd.f32 %v417, %v520
      %v522 = vpop.f32.mrf.mxu0
      %v523 = vpop.f32.mrf.mxu0
      %v524 = vadd.f32 %v417, %v523
      %v525 = vpop.f32.mrf.mxu0
      %526 = vmatprep.mubr.bf16.mxu0 0
      %527 = vmatmul.mubr.bf16.gmra.mxu0 %v445
      %v528 = vpop.f32.mrf.mxu0
      %v529 = vadd.f32 %v417, %v528
      %v530 = vpop.f32.mrf.mxu0
      %v531 = vpop.f32.mrf.mxu0
      %v532 = vadd.f32 %v417, %v531
      %v533 = vpop.f32.mrf.mxu0
      %534 = vmatprep.mubr.bf16.mxu0 0
      %535 = vmatmul.mubr.bf16.gmra.mxu0 %v448
      %v536 = vpop.f32.mrf.mxu0
      %v537 = vadd.f32 %v417, %v536
      %v538 = vpop.f32.mrf.mxu0
      %v539 = vpop.f32.mrf.mxu0
      %v540 = vadd.f32 %v417, %v539
      %v541 = vpop.f32.mrf.mxu0
      %542 = vmatprep.mubr.bf16.mxu0 0
      %543 = vmatmul.mubr.bf16.gmra.mxu0 %v451
      %v544 = vpop.f32.mrf.mxu0
      %v545 = vadd.f32 %v417, %v544
      %v546 = vpop.f32.mrf.mxu0
      %v547 = vpop.f32.mrf.mxu0
      %v548 = vadd.f32 %v417, %v547
      %v549 = vpop.f32.mrf.mxu0
      %550 = vmatprep.mubr.bf16.mxu0 0
      %551 = vmatmul.mubr.bf16.gmra.mxu0 %v454
      %v552 = vpop.f32.mrf.mxu0
      %v553 = vadd.f32 %v417, %v552
      %v554 = vpop.f32.mrf.mxu0
      %v555 = vpop.f32.mrf.mxu0
      %v556 = vadd.f32 %v417, %v555
      %v557 = vpop.f32.mrf.mxu0
      %558 = vmatprep.mubr.bf16.mxu0 0
      %559 = vmatmul.mubr.bf16.gmra.mxu0 %v457
      %v560 = vpop.f32.mrf.mxu0
      %v561 = vadd.f32 %v417, %v560
      %v562 = vpop.f32.mrf.mxu0
      %v563 = vpop.f32.mrf.mxu0
      %v564 = vadd.f32 %v417, %v563
      %v565 = vpop.f32.mrf.mxu0
      %566 = vmatprep.mubr.bf16.mxu0 0
      %567 = vmatmul.mubr.bf16.gmra.mxu0 %v460
      %v568 = vpop.f32.mrf.mxu0
      %v569 = vadd.f32 %v417, %v568
      %v570 = vpop.f32.mrf.mxu0
      %v571 = vpop.f32.mrf.mxu0
      %v572 = vadd.f32 %v417, %v571
      %v573 = vpop.f32.mrf.mxu0
      %574 = vdwg.mxu0
      %v575 = vmax.f32 %v497, 0.0
      %v576 = vmax.f32 %v500, 0.0
      %v577 = vmax.f32 %v505, 0.0
      %v578 = vmax.f32 %v508, 0.0
      %v579 = vmax.f32 %v513, 0.0
      %v580 = vmax.f32 %v516, 0.0
      %v581 = vmax.f32 %v521, 0.0
      %v582 = vmax.f32 %v524, 0.0
      %v583 = vmax.f32 %v529, 0.0
      %v584 = vmax.f32 %v532, 0.0
      %v585 = vmax.f32 %v537, 0.0
      %v586 = vmax.f32 %v540, 0.0
      %v587 = vmax.f32 %v545, 0.0
      %v588 = vmax.f32 %v548, 0.0
      %v589 = vmax.f32 %v553, 0.0
      %v590 = vmax.f32 %v556, 0.0
      %v591 = vmax.f32 %v561, 0.0
      %v592 = vmax.f32 %v564, 0.0
      %v593 = vmax.f32 %v569, 0.0
      %v594 = vmax.f32 %v572, 0.0
      %v595 = vpack.c.bf16 %v576, %v575
      %v596 = vpack.c.bf16 %v578, %v577
      %v597 = vpack.c.bf16 %v580, %v579
      %v598 = vpack.c.bf16 %v582, %v581
      %v599 = vpack.c.bf16 %v584, %v583
      %v600 = vpack.c.bf16 %v586, %v585
      %v601 = vpack.c.bf16 %v588, %v587
      %v602 = vpack.c.bf16 %v590, %v589
      %v603 = vpack.c.bf16 %v592, %v591
      %v604 = vpack.c.bf16 %v594, %v593
      %v605 = vld [vmem:[%s3] sm:$0xf]
      %v606 = vld [vmem:[%s3 + $0x4] sm:$0xf]
      %v607 = vld [vmem:[%s3 + $0x8] sm:$0xf]
      %v608 = vld [vmem:[%s3 + $0xc] sm:$0xf]
      %v609 = vld [vmem:[%s3 + $0x10] sm:$0xf]
      %v610 = vld [vmem:[%s3 + $0x14] sm:$0xf]
      %v611 = vld [vmem:[%s3 + $0x18] sm:$0xf]
      %v612 = vld [vmem:[%s3 + $0x1c] sm:$0xf]
      %v613 = vld [vmem:[%s3 + $0x20] sm:$0xf]
      %v614 = vld [vmem:[%s3 + $0x24] sm:$0xf]
      %v615 = vld [vmem:[%s3 + $0x28] sm:$0xf]
      %v616 = vld [vmem:[%s3 + $0x2c] sm:$0xf]
      %v617 = vld [vmem:[%s3 + $0x30] sm:$0xf]
      %v618 = vld [vmem:[%s3 + $0x34] sm:$0xf]
      %v619 = vld [vmem:[%s3 + $0x38] sm:$0xf]
      %v620 = vld [vmem:[%s3 + $0x3c] sm:$0xf]
      %v621 = vld [vmem:[%s4] sm:$0x1]
      %v623 = vlaneseq
      %v624 = vshrl.u32 %v623, 7
      %v625 = vsub.s32 0, %v624
      %v626 = vrot.slane %v621, %v625
      %v644 = vunpack.c.l.b16 %v605
      %v645 = vunpack.c.l.b16 %v606
      %v646 = vunpack.c.l.b16 %v607
      %v647 = vunpack.c.l.b16 %v608
      %v648 = vunpack.c.l.b16 %v609
      %v649 = vunpack.c.l.b16 %v610
      %v650 = vunpack.c.l.b16 %v611
      %v651 = vunpack.c.l.b16 %v612
      %v652 = vunpack.c.l.b16 %v613
      %v653 = vunpack.c.l.b16 %v614
      %v654 = vunpack.c.l.b16 %v615
      %v655 = vunpack.c.l.b16 %v616
      %v656 = vunpack.c.l.b16 %v617
      %v657 = vunpack.c.l.b16 %v618
      %v658 = vunpack.c.l.b16 %v619
      %v659 = vunpack.c.l.b16 %v620
      %v660 = vpack.c.b16 %v645, %v644
      %v661 = vpack.c.b16 %v647, %v646
      %v662 = vpack.c.b16 %v649, %v648
      %v663 = vpack.c.b16 %v651, %v650
      %v664 = vpack.c.b16 %v653, %v652
      %v665 = vpack.c.b16 %v655, %v654
      %v666 = vpack.c.b16 %v657, %v656
      %v667 = vpack.c.b16 %v659, %v658
      %676 = vmatprep.subr.bf16.mxu0 0
      %677 = vmatpush1.bf16.msra.mxu0 %v667
      %678 = vmatprep.subr.bf16.mxu0 0
      %679 = vmatpush1.bf16.msra.mxu0 %v666
      %680 = vmatprep.subr.bf16.mxu0 0
      %681 = vmatpush1.bf16.msra.mxu0 %v665
      %682 = vmatprep.subr.bf16.mxu0 0
      %683 = vmatpush1.bf16.msra.mxu0 %v664
      %684 = vmatprep.subr.bf16.mxu0 0
      %685 = vmatpush1.bf16.msra.mxu0 %v663
      %686 = vmatprep.subr.bf16.mxu0 0
      %687 = vmatpush1.bf16.msra.mxu0 %v662
      %688 = vmatprep.subr.bf16.mxu0 0
      %689 = vmatpush1.bf16.msra.mxu0 %v661
      %690 = vmatprep.subr.bf16.mxu0 0
      %691 = vmatpush1.bf16.msra.mxu0 %v660
      %692 = vmatprep.subr.bf16.mxu0 0
      %693 = vmatpush2.bf16.msra.mxu0 0
      %694 = vmatprep.subr.bf16.mxu0 0
      %695 = vmatpush2.bf16.msra.mxu0 0
      %696 = vmatprep.subr.bf16.mxu0 0
      %697 = vmatpush2.bf16.msra.mxu0 0
      %698 = vmatprep.subr.bf16.mxu0 0
      %699 = vmatpush2.bf16.msra.mxu0 0
      %700 = vmatprep.subr.bf16.mxu0 0
      %701 = vmatpush2.bf16.msra.mxu0 0
      %702 = vmatprep.subr.bf16.mxu0 0
      %703 = vmatpush2.bf16.msra.mxu0 0
      %704 = vmatprep.subr.bf16.mxu0 0
      %705 = vmatpush2.bf16.msra.mxu0 0
      %706 = vmatprep.subr.bf16.mxu0 0
      %707 = vmatpush2.bf16.msra.mxu0 0
      %708 = vmatprep.mubr.bf16.mxu0 0
      %709 = vmatmul.mubr.bf16.gmra.mxu0 %v595
      %v710 = vpop.f32.mrf.mxu0
      %v711 = vadd.f32 %v626, %v710
      %v712 = vpop.f32.mrf.mxu0
      %v713 = vpop.f32.mrf.mxu0
      %v714 = vadd.f32 %v626, %v713
      %v715 = vpop.f32.mrf.mxu0
      %716 = vmatprep.mubr.bf16.mxu0 0
      %717 = vmatmul.mubr.bf16.gmra.mxu0 %v596
      %v718 = vpop.f32.mrf.mxu0
      %v719 = vadd.f32 %v626, %v718
      %v720 = vpop.f32.mrf.mxu0
      %v721 = vpop.f32.mrf.mxu0
      %v722 = vadd.f32 %v626, %v721
      %v723 = vpop.f32.mrf.mxu0
      %724 = vmatprep.mubr.bf16.mxu0 0
      %725 = vmatmul.mubr.bf16.gmra.mxu0 %v597
      %v726 = vpop.f32.mrf.mxu0
      %v727 = vadd.f32 %v626, %v726
      %v728 = vpop.f32.mrf.mxu0
      %v729 = vpop.f32.mrf.mxu0
      %v730 = vadd.f32 %v626, %v729
      %v731 = vpop.f32.mrf.mxu0
      %732 = vmatprep.mubr.bf16.mxu0 0
      %733 = vmatmul.mubr.bf16.gmra.mxu0 %v598
      %v734 = vpop.f32.mrf.mxu0
      %v735 = vadd.f32 %v626, %v734
      %v736 = vpop.f32.mrf.mxu0
      %v737 = vpop.f32.mrf.mxu0
      %v738 = vadd.f32 %v626, %v737
      %v739 = vpop.f32.mrf.mxu0
      %740 = vmatprep.mubr.bf16.mxu0 0
      %741 = vmatmul.mubr.bf16.gmra.mxu0 %v599
      %v742 = vpop.f32.mrf.mxu0
      %v743 = vadd.f32 %v626, %v742
      %v744 = vpop.f32.mrf.mxu0
      %v745 = vpop.f32.mrf.mxu0
      %v746 = vadd.f32 %v626, %v745
      %v747 = vpop.f32.mrf.mxu0
      %748 = vmatprep.mubr.bf16.mxu0 0
      %749 = vmatmul.mubr.bf16.gmra.mxu0 %v600
      %v750 = vpop.f32.mrf.mxu0
      %v751 = vadd.f32 %v626, %v750
      %v752 = vpop.f32.mrf.mxu0
      %v753 = vpop.f32.mrf.mxu0
      %v754 = vadd.f32 %v626, %v753
      %v755 = vpop.f32.mrf.mxu0
      %756 = vmatprep.mubr.bf16.mxu0 0
      %757 = vmatmul.mubr.bf16.gmra.mxu0 %v601
      %v758 = vpop.f32.mrf.mxu0
      %v759 = vadd.f32 %v626, %v758
      %v760 = vpop.f32.mrf.mxu0
      %v761 = vpop.f32.mrf.mxu0
      %v762 = vadd.f32 %v626, %v761
      %v763 = vpop.f32.mrf.mxu0
      %764 = vmatprep.mubr.bf16.mxu0 0
      %765 = vmatmul.mubr.bf16.gmra.mxu0 %v602
      %v766 = vpop.f32.mrf.mxu0
      %v767 = vadd.f32 %v626, %v766
      %v768 = vpop.f32.mrf.mxu0
      %v769 = vpop.f32.mrf.mxu0
      %v770 = vadd.f32 %v626, %v769
      %v771 = vpop.f32.mrf.mxu0
      %772 = vmatprep.mubr.bf16.mxu0 0
      %773 = vmatmul.mubr.bf16.gmra.mxu0 %v603
      %v774 = vpop.f32.mrf.mxu0
      %v775 = vadd.f32 %v626, %v774
      %v776 = vpop.f32.mrf.mxu0
      %v777 = vpop.f32.mrf.mxu0
      %v778 = vadd.f32 %v626, %v777
      %v779 = vpop.f32.mrf.mxu0
      %780 = vmatprep.mubr.bf16.mxu0 0
      %781 = vmatmul.mubr.bf16.gmra.mxu0 %v604
      %v782 = vpop.f32.mrf.mxu0
      %v783 = vadd.f32 %v626, %v782
      %v784 = vpop.f32.mrf.mxu0
      %v785 = vpop.f32.mrf.mxu0
      %v786 = vadd.f32 %v626, %v785
      %v787 = vpop.f32.mrf.mxu0
      %788 = vdwg.mxu0
      %v789 = vmax.f32 %v711, 0.0
      %v790 = vmax.f32 %v714, 0.0
      %v791 = vmax.f32 %v719, 0.0
      %v792 = vmax.f32 %v722, 0.0
      %v793 = vmax.f32 %v727, 0.0
      %v794 = vmax.f32 %v730, 0.0
      %v795 = vmax.f32 %v735, 0.0
      %v796 = vmax.f32 %v738, 0.0
      %v797 = vmax.f32 %v743, 0.0
      %v798 = vmax.f32 %v746, 0.0
      %v799 = vmax.f32 %v751, 0.0
      %v800 = vmax.f32 %v754, 0.0
      %v801 = vmax.f32 %v759, 0.0
      %v802 = vmax.f32 %v762, 0.0
      %v803 = vmax.f32 %v767, 0.0
      %v804 = vmax.f32 %v770, 0.0
      %v805 = vmax.f32 %v775, 0.0
      %v806 = vmax.f32 %v778, 0.0
      %v807 = vmax.f32 %v783, 0.0
      %v808 = vmax.f32 %v786, 0.0
      %v809 = vpack.c.bf16 %v790, %v789
      %v810 = vpack.c.bf16 %v792, %v791
      %v811 = vpack.c.bf16 %v794, %v793
      %v812 = vpack.c.bf16 %v796, %v795
      %v813 = vpack.c.bf16 %v798, %v797
      %v814 = vpack.c.bf16 %v800, %v799
      %v815 = vpack.c.bf16 %v802, %v801
      %v816 = vpack.c.bf16 %v804, %v803
      %v817 = vpack.c.bf16 %v806, %v805
      %v818 = vpack.c.bf16 %v808, %v807
      %v829 = vunpack.c.l.b16 %v809
      %v830 = vunpack.c.h.b16 %v809
      %v831 = vunpack.c.l.b16 %v810
      %v832 = vunpack.c.h.b16 %v810
      %v833 = vunpack.c.l.b16 %v811
      %v834 = vunpack.c.h.b16 %v811
      %v835 = vunpack.c.l.b16 %v812
      %v836 = vunpack.c.h.b16 %v812
      %v837 = vunpack.c.l.b16 %v813
      %v838 = vunpack.c.h.b16 %v813
      %v839 = vunpack.c.l.b16 %v814
      %v840 = vunpack.c.h.b16 %v814
      %v841 = vunpack.c.l.b16 %v815
      %v842 = vunpack.c.h.b16 %v815
      %v843 = vunpack.c.l.b16 %v816
      %v844 = vunpack.c.h.b16 %v816
      %v845 = vunpack.c.l.b16 %v817
      %v846 = vunpack.c.h.b16 %v817
      %v847 = vunpack.c.l.b16 %v818
      %v848 = vunpack.c.h.b16 %v818
      %v849 = vpack.c.b16 %v829, %v829
      %v850 = vpack.c.b16 %v830, %v830
      %v851 = vpack.c.b16 %v831, %v831
      %v852 = vpack.c.b16 %v832, %v832
      %v853 = vpack.c.b16 %v833, %v833
      %v854 = vpack.c.b16 %v834, %v834
      %v855 = vpack.c.b16 %v835, %v835
      %v856 = vpack.c.b16 %v836, %v836
      %v857 = vpack.c.b16 %v837, %v837
      %v858 = vpack.c.b16 %v838, %v838
      %v859 = vpack.c.b16 %v839, %v839
      %v860 = vpack.c.b16 %v840, %v840
      %v861 = vpack.c.b16 %v841, %v841
      %v862 = vpack.c.b16 %v842, %v842
      %v863 = vpack.c.b16 %v843, %v843
      %v864 = vpack.c.b16 %v844, %v844
      %v865 = vpack.c.b16 %v845, %v845
      %v866 = vpack.c.b16 %v846, %v846
      %v867 = vpack.c.b16 %v847, %v847
      %v868 = vpack.c.b16 %v848, %v848
      %vm889 = vcmask 519168
      %890 = vst.msk [vmem:[%s369] sm:$0xf] %vm889, %v849
      %891 = vst.msk [vmem:[%s369 + $0x4] sm:$0xf] %vm889, %v850
      %892 = vst.msk [vmem:[%s369 + $0x8] sm:$0xf] %vm889, %v851
      %893 = vst.msk [vmem:[%s369 + $0xc] sm:$0xf] %vm889, %v852
      %894 = vst.msk [vmem:[%s369 + $0x10] sm:$0xf] %vm889, %v853
      %895 = vst.msk [vmem:[%s369 + $0x14] sm:$0xf] %vm889, %v854
      %896 = vst.msk [vmem:[%s369 + $0x18] sm:$0xf] %vm889, %v855
      %897 = vst.msk [vmem:[%s369 + $0x1c] sm:$0xf] %vm889, %v856
      %898 = vst.msk [vmem:[%s369 + $0x20] sm:$0xf] %vm889, %v857
      %899 = vst.msk [vmem:[%s369 + $0x24] sm:$0xf] %vm889, %v858
      %900 = vst.msk [vmem:[%s369 + $0x28] sm:$0xf] %vm889, %v859
      %901 = vst.msk [vmem:[%s369 + $0x2c] sm:$0xf] %vm889, %v860
      %902 = vst.msk [vmem:[%s369 + $0x30] sm:$0xf] %vm889, %v861
      %903 = vst.msk [vmem:[%s369 + $0x34] sm:$0xf] %vm889, %v862
      %904 = vst.msk [vmem:[%s369 + $0x38] sm:$0xf] %vm889, %v863
      %905 = vst.msk [vmem:[%s369 + $0x3c] sm:$0xf] %vm889, %v864
      %906 = vst.msk [vmem:[%s369 + $0x40] sm:$0xf] %vm889, %v865
      %907 = vst.msk [vmem:[%s369 + $0x44] sm:$0xf] %vm889, %v866
      %908 = vst.msk [vmem:[%s369 + $0x48] sm:$0xf] %vm889, %v867
      %909 = vst.msk [vmem:[%s369 + $0x4c] sm:$0xf] %vm889, %v868
      %v910 = vld [vmem:[%s5] sm:$0xf]
      %v911 = vld [vmem:[%s5 + $0x4] sm:$0xf]
      %v912 = vld [vmem:[%s5 + $0x8] sm:$0xf]
      %v913 = vld [vmem:[%s5 + $0xc] sm:$0xf]
      %v914 = vld [vmem:[%s5 + $0x10] sm:$0xf]
      %v915 = vld [vmem:[%s5 + $0x14] sm:$0xf]
      %v916 = vld [vmem:[%s5 + $0x18] sm:$0xf]
      %v917 = vld [vmem:[%s5 + $0x1c] sm:$0xf]
      %v918 = vld [vmem:[%s6] sm:$0x1]
      %v920 = vlaneseq
      %v921 = vshrl.u32 %v920, 7
      %v922 = vsub.s32 0, %v921
      %v923 = vrot.slane %v918, %v922
      %v933 = vunpack.c.l.b16 %v910
      %v934 = vunpack.c.l.b16 %v911
      %v935 = vunpack.c.l.b16 %v912
      %v936 = vunpack.c.l.b16 %v913
      %v937 = vunpack.c.l.b16 %v914
      %v938 = vunpack.c.l.b16 %v915
      %v939 = vunpack.c.l.b16 %v916
      %v940 = vunpack.c.l.b16 %v917
      %v941 = vpack.c.b16 %v934, %v933
      %v942 = vpack.c.b16 %v936, %v935
      %v943 = vpack.c.b16 %v938, %v937
      %v944 = vpack.c.b16 %v940, %v939
      %vm949 = vcmask 523264
      %v951 = vsel %vm949, %v809, 0
      %v954 = vsel %vm949, %v810, 0
      %v957 = vsel %vm949, %v811, 0
      %v960 = vsel %vm949, %v812, 0
      %v963 = vsel %vm949, %v813, 0
      %v966 = vsel %vm949, %v814, 0
      %v969 = vsel %vm949, %v815, 0
      %v972 = vsel %vm949, %v816, 0
      %v975 = vsel %vm949, %v817, 0
      %v978 = vsel %vm949, %v818, 0
      %980 = vmatprep.subr.bf16.mxu0 0
      %981 = vmatpush1.bf16.msra.mxu0 0
      %982 = vmatprep.subr.bf16.mxu0 0
      %983 = vmatpush1.bf16.msra.mxu0 0
      %984 = vmatprep.subr.bf16.mxu0 0
      %985 = vmatpush1.bf16.msra.mxu0 0
      %986 = vmatprep.subr.bf16.mxu0 0
      %987 = vmatpush1.bf16.msra.mxu0 0
      %988 = vmatprep.subr.bf16.mxu0 0
      %989 = vmatpush1.bf16.msra.mxu0 %v944
      %990 = vmatprep.subr.bf16.mxu0 0
      %991 = vmatpush1.bf16.msra.mxu0 %v943
      %992 = vmatprep.subr.bf16.mxu0 0
      %993 = vmatpush1.bf16.msra.mxu0 %v942
      %994 = vmatprep.subr.bf16.mxu0 0
      %995 = vmatpush1.bf16.msra.mxu0 %v941
      %996 = vmatprep.subr.bf16.mxu0 0
      %997 = vmatpush2.bf16.msra.mxu0 0
      %998 = vmatprep.subr.bf16.mxu0 0
      %999 = vmatpush2.bf16.msra.mxu0 0
      %1000 = vmatprep.subr.bf16.mxu0 0
      %1001 = vmatpush2.bf16.msra.mxu0 0
      %1002 = vmatprep.subr.bf16.mxu0 0
      %1003 = vmatpush2.bf16.msra.mxu0 0
      %1004 = vmatprep.subr.bf16.mxu0 0
      %1005 = vmatpush2.bf16.msra.mxu0 0
      %1006 = vmatprep.subr.bf16.mxu0 0
      %1007 = vmatpush2.bf16.msra.mxu0 0
      %1008 = vmatprep.subr.bf16.mxu0 0
      %1009 = vmatpush2.bf16.msra.mxu0 0
      %1010 = vmatprep.subr.bf16.mxu0 0
      %1011 = vmatpush2.bf16.msra.mxu0 0
      %1012 = vmatprep.mubr.bf16.mxu0 0
      %1013 = vmatmul.mubr.bf16.gmra.mxu0 %v951
      %v1014 = vpop.f32.mrf.mxu0
      %v1015 = vadd.f32 %v923, %v1014
      %v1016 = vpop.f32.mrf.mxu0
      %v1017 = vpop.f32.mrf.mxu0
      %v1018 = vadd.f32 %v923, %v1017
      %v1019 = vpop.f32.mrf.mxu0
      %1020 = vmatprep.mubr.bf16.mxu0 0
      %1021 = vmatmul.mubr.bf16.gmra.mxu0 %v954
      %v1022 = vpop.f32.mrf.mxu0
      %v1023 = vadd.f32 %v923, %v1022
      %v1024 = vpop.f32.mrf.mxu0
      %v1025 = vpop.f32.mrf.mxu0
      %v1026 = vadd.f32 %v923, %v1025
      %v1027 = vpop.f32.mrf.mxu0
      %1028 = vmatprep.mubr.bf16.mxu0 0
      %1029 = vmatmul.mubr.bf16.gmra.mxu0 %v957
      %v1030 = vpop.f32.mrf.mxu0
      %v1031 = vadd.f32 %v923, %v1030
      %v1032 = vpop.f32.mrf.mxu0
      %v1033 = vpop.f32.mrf.mxu0
      %v1034 = vadd.f32 %v923, %v1033
      %v1035 = vpop.f32.mrf.mxu0
      %1036 = vmatprep.mubr.bf16.mxu0 0
      %1037 = vmatmul.mubr.bf16.gmra.mxu0 %v960
      %v1038 = vpop.f32.mrf.mxu0
      %v1039 = vadd.f32 %v923, %v1038
      %v1040 = vpop.f32.mrf.mxu0
      %v1041 = vpop.f32.mrf.mxu0
      %v1042 = vadd.f32 %v923, %v1041
      %v1043 = vpop.f32.mrf.mxu0
      %1044 = vmatprep.mubr.bf16.mxu0 0
      %1045 = vmatmul.mubr.bf16.gmra.mxu0 %v963
      %v1046 = vpop.f32.mrf.mxu0
      %v1047 = vadd.f32 %v923, %v1046
      %v1048 = vpop.f32.mrf.mxu0
      %v1049 = vpop.f32.mrf.mxu0
      %v1050 = vadd.f32 %v923, %v1049
      %v1051 = vpop.f32.mrf.mxu0
      %1052 = vmatprep.mubr.bf16.mxu0 0
      %1053 = vmatmul.mubr.bf16.gmra.mxu0 %v966
      %v1054 = vpop.f32.mrf.mxu0
      %v1055 = vadd.f32 %v923, %v1054
      %v1056 = vpop.f32.mrf.mxu0
      %v1057 = vpop.f32.mrf.mxu0
      %v1058 = vadd.f32 %v923, %v1057
      %v1059 = vpop.f32.mrf.mxu0
      %1060 = vmatprep.mubr.bf16.mxu0 0
      %1061 = vmatmul.mubr.bf16.gmra.mxu0 %v969
      %v1062 = vpop.f32.mrf.mxu0
      %v1063 = vadd.f32 %v923, %v1062
      %v1064 = vpop.f32.mrf.mxu0
      %v1065 = vpop.f32.mrf.mxu0
      %v1066 = vadd.f32 %v923, %v1065
      %v1067 = vpop.f32.mrf.mxu0
      %1068 = vmatprep.mubr.bf16.mxu0 0
      %1069 = vmatmul.mubr.bf16.gmra.mxu0 %v972
      %v1070 = vpop.f32.mrf.mxu0
      %v1071 = vadd.f32 %v923, %v1070
      %v1072 = vpop.f32.mrf.mxu0
      %v1073 = vpop.f32.mrf.mxu0
      %v1074 = vadd.f32 %v923, %v1073
      %v1075 = vpop.f32.mrf.mxu0
      %1076 = vmatprep.mubr.bf16.mxu0 0
      %1077 = vmatmul.mubr.bf16.gmra.mxu0 %v975
      %v1078 = vpop.f32.mrf.mxu0
      %v1079 = vadd.f32 %v923, %v1078
      %v1080 = vpop.f32.mrf.mxu0
      %v1081 = vpop.f32.mrf.mxu0
      %v1082 = vadd.f32 %v923, %v1081
      %v1083 = vpop.f32.mrf.mxu0
      %1084 = vmatprep.mubr.bf16.mxu0 0
      %1085 = vmatmul.mubr.bf16.gmra.mxu0 %v978
      %v1086 = vpop.f32.mrf.mxu0
      %v1087 = vadd.f32 %v923, %v1086
      %v1088 = vpop.f32.mrf.mxu0
      %v1089 = vpop.f32.mrf.mxu0
      %v1090 = vadd.f32 %v923, %v1089
      %v1091 = vpop.f32.mrf.mxu0
      %1092 = vdwg.mxu0
      %v1093 = vmax.f32 %v1015, 0.0
      %v1094 = vmax.f32 %v1018, 0.0
      %v1095 = vmax.f32 %v1023, 0.0
      %v1096 = vmax.f32 %v1026, 0.0
      %v1097 = vmax.f32 %v1031, 0.0
      %v1098 = vmax.f32 %v1034, 0.0
      %v1099 = vmax.f32 %v1039, 0.0
      %v1100 = vmax.f32 %v1042, 0.0
      %v1101 = vmax.f32 %v1047, 0.0
      %v1102 = vmax.f32 %v1050, 0.0
      %v1103 = vmax.f32 %v1055, 0.0
      %v1104 = vmax.f32 %v1058, 0.0
      %v1105 = vmax.f32 %v1063, 0.0
      %v1106 = vmax.f32 %v1066, 0.0
      %v1107 = vmax.f32 %v1071, 0.0
      %v1108 = vmax.f32 %v1074, 0.0
      %v1109 = vmax.f32 %v1079, 0.0
      %v1110 = vmax.f32 %v1082, 0.0
      %v1111 = vmax.f32 %v1087, 0.0
      %v1112 = vmax.f32 %v1090, 0.0
      %v1113 = vpack.c.bf16 %v1094, %v1093
      %v1114 = vpack.c.bf16 %v1096, %v1095
      %v1115 = vpack.c.bf16 %v1098, %v1097
      %v1116 = vpack.c.bf16 %v1100, %v1099
      %v1117 = vpack.c.bf16 %v1102, %v1101
      %v1118 = vpack.c.bf16 %v1104, %v1103
      %v1119 = vpack.c.bf16 %v1106, %v1105
      %v1120 = vpack.c.bf16 %v1108, %v1107
      %v1121 = vpack.c.bf16 %v1110, %v1109
      %v1122 = vpack.c.bf16 %v1112, %v1111
      %v1123 = vld [vmem:[%s7] sm:$0xf]
      %v1124 = vld [vmem:[%s7 + $0x4] sm:$0xf]
      %v1125 = vld [vmem:[%s7 + $0x8] sm:$0xf]
      %v1126 = vld [vmem:[%s7 + $0xc] sm:$0xf]
      %v1127 = vld [vmem:[%s8] sm:$0x1]
      %v1129 = vlaneseq
      %v1130 = vshrl.u32 %v1129, 7
      %v1131 = vsub.s32 0, %v1130
      %v1132 = vrot.slane %v1127, %v1131
      %v1138 = vunpack.c.l.b16 %v1123
      %v1139 = vunpack.c.l.b16 %v1124
      %v1140 = vunpack.c.l.b16 %v1125
      %v1141 = vunpack.c.l.b16 %v1126
      %v1142 = vpack.c.b16 %v1139, %v1138
      %v1143 = vpack.c.b16 %v1141, %v1140
      %v1147 = vsel %vm431, %v1113, 0
      %v1150 = vsel %vm431, %v1114, 0
      %v1153 = vsel %vm431, %v1115, 0
      %v1156 = vsel %vm431, %v1116, 0
      %v1159 = vsel %vm431, %v1117, 0
      %v1162 = vsel %vm431, %v1118, 0
      %v1165 = vsel %vm431, %v1119, 0
      %v1168 = vsel %vm431, %v1120, 0
      %v1171 = vsel %vm431, %v1121, 0
      %v1174 = vsel %vm431, %v1122, 0
      %1176 = vmatprep.subr.bf16.mxu0 0
      %1177 = vmatpush1.bf16.msra.mxu0 0
      %1178 = vmatprep.subr.bf16.mxu0 0
      %1179 = vmatpush1.bf16.msra.mxu0 0
      %1180 = vmatprep.subr.bf16.mxu0 0
      %1181 = vmatpush1.bf16.msra.mxu0 0
      %1182 = vmatprep.subr.bf16.mxu0 0
      %1183 = vmatpush1.bf16.msra.mxu0 0
      %1184 = vmatprep.subr.bf16.mxu0 0
      %1185 = vmatpush1.bf16.msra.mxu0 0
      %1186 = vmatprep.subr.bf16.mxu0 0
      %1187 = vmatpush1.bf16.msra.mxu0 0
      %1188 = vmatprep.subr.bf16.mxu0 0
      %1189 = vmatpush1.bf16.msra.mxu0 %v1143
      %1190 = vmatprep.subr.bf16.mxu0 0
      %1191 = vmatpush1.bf16.msra.mxu0 %v1142
      %1192 = vmatprep.subr.bf16.mxu0 0
      %1193 = vmatpush2.bf16.msra.mxu0 0
      %1194 = vmatprep.subr.bf16.mxu0 0
      %1195 = vmatpush2.bf16.msra.mxu0 0
      %1196 = vmatprep.subr.bf16.mxu0 0
      %1197 = vmatpush2.bf16.msra.mxu0 0
      %1198 = vmatprep.subr.bf16.mxu0 0
      %1199 = vmatpush2.bf16.msra.mxu0 0
      %1200 = vmatprep.subr.bf16.mxu0 0
      %1201 = vmatpush2.bf16.msra.mxu0 0
      %1202 = vmatprep.subr.bf16.mxu0 0
      %1203 = vmatpush2.bf16.msra.mxu0 0
      %1204 = vmatprep.subr.bf16.mxu0 0
      %1205 = vmatpush2.bf16.msra.mxu0 0
      %1206 = vmatprep.subr.bf16.mxu0 0
      %1207 = vmatpush2.bf16.msra.mxu0 0
      %1208 = vmatprep.mubr.bf16.mxu0 0
      %1209 = vmatmul.mubr.bf16.gmra.mxu0 %v1147
      %v1210 = vpop.f32.mrf.mxu0
      %v1211 = vadd.f32 %v1132, %v1210
      %v1212 = vpop.f32.mrf.mxu0
      %v1213 = vpop.f32.mrf.mxu0
      %v1214 = vadd.f32 %v1132, %v1213
      %v1215 = vpop.f32.mrf.mxu0
      %1216 = vmatprep.mubr.bf16.mxu0 0
      %1217 = vmatmul.mubr.bf16.gmra.mxu0 %v1150
      %v1218 = vpop.f32.mrf.mxu0
      %v1219 = vadd.f32 %v1132, %v1218
      %v1220 = vpop.f32.mrf.mxu0
      %v1221 = vpop.f32.mrf.mxu0
      %v1222 = vadd.f32 %v1132, %v1221
      %v1223 = vpop.f32.mrf.mxu0
      %1224 = vmatprep.mubr.bf16.mxu0 0
      %1225 = vmatmul.mubr.bf16.gmra.mxu0 %v1153
      %v1226 = vpop.f32.mrf.mxu0
      %v1227 = vadd.f32 %v1132, %v1226
      %v1228 = vpop.f32.mrf.mxu0
      %v1229 = vpop.f32.mrf.mxu0
      %v1230 = vadd.f32 %v1132, %v1229
      %v1231 = vpop.f32.mrf.mxu0
      %1232 = vmatprep.mubr.bf16.mxu0 0
      %1233 = vmatmul.mubr.bf16.gmra.mxu0 %v1156
      %v1234 = vpop.f32.mrf.mxu0
      %v1235 = vadd.f32 %v1132, %v1234
      %v1236 = vpop.f32.mrf.mxu0
      %v1237 = vpop.f32.mrf.mxu0
      %v1238 = vadd.f32 %v1132, %v1237
      %v1239 = vpop.f32.mrf.mxu0
      %1240 = vmatprep.mubr.bf16.mxu0 0
      %1241 = vmatmul.mubr.bf16.gmra.mxu0 %v1159
      %v1242 = vpop.f32.mrf.mxu0
      %v1243 = vadd.f32 %v1132, %v1242
      %v1244 = vpop.f32.mrf.mxu0
      %v1245 = vpop.f32.mrf.mxu0
      %v1246 = vadd.f32 %v1132, %v1245
      %v1247 = vpop.f32.mrf.mxu0
      %1248 = vmatprep.mubr.bf16.mxu0 0
      %1249 = vmatmul.mubr.bf16.gmra.mxu0 %v1162
      %v1250 = vpop.f32.mrf.mxu0
      %v1251 = vadd.f32 %v1132, %v1250
      %v1252 = vpop.f32.mrf.mxu0
      %v1253 = vpop.f32.mrf.mxu0
      %v1254 = vadd.f32 %v1132, %v1253
      %v1255 = vpop.f32.mrf.mxu0
      %1256 = vmatprep.mubr.bf16.mxu0 0
      %1257 = vmatmul.mubr.bf16.gmra.mxu0 %v1165
      %v1258 = vpop.f32.mrf.mxu0
      %v1259 = vadd.f32 %v1132, %v1258
      %v1260 = vpop.f32.mrf.mxu0
      %v1261 = vpop.f32.mrf.mxu0
      %v1262 = vadd.f32 %v1132, %v1261
      %v1263 = vpop.f32.mrf.mxu0
      %1264 = vmatprep.mubr.bf16.mxu0 0
      %1265 = vmatmul.mubr.bf16.gmra.mxu0 %v1168
      %v1266 = vpop.f32.mrf.mxu0
      %v1267 = vadd.f32 %v1132, %v1266
      %v1268 = vpop.f32.mrf.mxu0
      %v1269 = vpop.f32.mrf.mxu0
      %v1270 = vadd.f32 %v1132, %v1269
      %v1271 = vpop.f32.mrf.mxu0
      %1272 = vmatprep.mubr.bf16.mxu0 0
      %1273 = vmatmul.mubr.bf16.gmra.mxu0 %v1171
      %v1274 = vpop.f32.mrf.mxu0
      %v1275 = vadd.f32 %v1132, %v1274
      %v1276 = vpop.f32.mrf.mxu0
      %v1277 = vpop.f32.mrf.mxu0
      %v1278 = vadd.f32 %v1132, %v1277
      %v1279 = vpop.f32.mrf.mxu0
      %1280 = vmatprep.mubr.bf16.mxu0 0
      %1281 = vmatmul.mubr.bf16.gmra.mxu0 %v1174
      %v1282 = vpop.f32.mrf.mxu0
      %v1283 = vadd.f32 %v1132, %v1282
      %v1284 = vpop.f32.mrf.mxu0
      %v1285 = vpop.f32.mrf.mxu0
      %v1286 = vadd.f32 %v1132, %v1285
      %v1287 = vpop.f32.mrf.mxu0
      %1288 = vdwg.mxu0
      %vm1289 = vcmask 15360
      %1290 = vst.msk [vmem:[%s375] sm:$0xff] %vm1289, %v1211
      %1291 = vst.msk [vmem:[%s375 + $0x8] sm:$0xff] %vm1289, %v1214
      %1292 = vst.msk [vmem:[%s375 + $0x10] sm:$0xff] %vm1289, %v1219
      %1293 = vst.msk [vmem:[%s375 + $0x18] sm:$0xff] %vm1289, %v1222
      %1294 = vst.msk [vmem:[%s375 + $0x20] sm:$0xff] %vm1289, %v1227
      %1295 = vst.msk [vmem:[%s375 + $0x28] sm:$0xff] %vm1289, %v1230
      %1296 = vst.msk [vmem:[%s375 + $0x30] sm:$0xff] %vm1289, %v1235
      %1297 = vst.msk [vmem:[%s375 + $0x38] sm:$0xff] %vm1289, %v1238
      %1298 = vst.msk [vmem:[%s375 + $0x40] sm:$0xff] %vm1289, %v1243
      %1299 = vst.msk [vmem:[%s375 + $0x48] sm:$0xff] %vm1289, %v1246
      %1300 = vst.msk [vmem:[%s375 + $0x50] sm:$0xff] %vm1289, %v1251
      %1301 = vst.msk [vmem:[%s375 + $0x58] sm:$0xff] %vm1289, %v1254
      %1302 = vst.msk [vmem:[%s375 + $0x60] sm:$0xff] %vm1289, %v1259
      %1303 = vst.msk [vmem:[%s375 + $0x68] sm:$0xff] %vm1289, %v1262
      %1304 = vst.msk [vmem:[%s375 + $0x70] sm:$0xff] %vm1289, %v1267
      %1305 = vst.msk [vmem:[%s375 + $0x78] sm:$0xff] %vm1289, %v1270
      %1306 = vst.msk [vmem:[%s375 + $0x80] sm:$0xff] %vm1289, %v1275
      %1307 = vst.msk [vmem:[%s375 + $0x88] sm:$0xff] %vm1289, %v1278
      %1308 = vst.msk [vmem:[%s375 + $0x90] sm:$0xff] %vm1289, %v1283
      %1309 = vst.msk [vmem:[%s375 + $0x98] sm:$0xff] %vm1289, %v1286
      %s1310 = smul.u32 20, %s22
      %p1311 = scmp.lt.s32.totalorder %s1310, 39
      %s1312 = scalar_select %p1311, %s1310, 39
      %s1313 = smul.addr %s1312, 4
      %s1314 = scalar_lea.vmem %s9, %s1313
      %s1315 = smul.u32 20, %s22
      %p1316 = scmp.lt.s32.totalorder %s1315, 39
      %s1317 = scalar_select %p1316, %s1315, 39
      %s1318 = smul.addr %s1317, 8
      %s1319 = scalar_lea.vmem %s10, %s1318
      // Predicated region
      $region57: #{tpu_custom_call.1} parent=55 // pred_check
        %p1320 = pneg %p234
      $region58: #{tpu_custom_call.1} parent=55 // pred_check_branch
        %1322 = sbr.rel (%p1320) target = $region60
      $region59: #{tpu_custom_call.1} parent=55 // pred_region
        %s1323 = smul.u32 20, %s22
      $region60: #{tpu_custom_call.1} parent=55 // pred_fallthru
        _
      // Predicated region
      $region61: #{tpu_custom_call.1} parent=55 // pred_check
        %p1324 = pneg %p260
      $region62: #{tpu_custom_call.1} parent=55 // pred_check_branch
        %1326 = sbr.rel (%p1324) target = $region64
      $region63: #{tpu_custom_call.1} parent=55 // pred_region
        %s1327 = smul.u32 20, %s22
      $region64: #{tpu_custom_call.1} parent=55 // pred_fallthru
        _
    $region56: #{tpu_custom_call.1} parent=5 // pred_fallthru
      _
    %p1328 = scmp.le.s32.totalorder 2, %s17
    // Predicated region
    $region65: #{tpu_custom_call.1} parent=5 // pred_check
      %p1329 = pneg %p1328
    $region66: #{tpu_custom_call.1} parent=5 // pred_check_branch
      %1331 = sbr.rel (%p1329) target = $region68
    $region67: #{tpu_custom_call.1} parent=5 // pred_region
      %s1332 = ssub.s32 %s17, 2
      // Predicated region
      $region69: #{tpu_custom_call.1} parent=67 // pred_check
        %p1333 = pneg %p240
      $region70: #{tpu_custom_call.1} parent=67 // pred_check_branch
        %1335 = sbr.rel (%p1333) target = $region72
      $region71: #{tpu_custom_call.1} parent=67 // pred_region
        %s1336 = smul.u32 20, %s23
        %p1337 = scmp.lt.s32.totalorder %s1336, 39
        %s1338 = scalar_select %p1337, %s1336, 39
        %s1339 = smul.addr %s1338, 4
        %s1340 = scalar_lea.vmem %s9, %s1339
      $region72: #{tpu_custom_call.1} parent=67 // pred_fallthru
        _
      // Predicated region
      $region73: #{tpu_custom_call.1} parent=67 // pred_check
        %p1341 = pneg %p266
      $region74: #{tpu_custom_call.1} parent=67 // pred_check_branch
        %1343 = sbr.rel (%p1341) target = $region76
      $region75: #{tpu_custom_call.1} parent=67 // pred_region
        %s1344 = smul.u32 20, %s23
        %p1345 = scmp.lt.s32.totalorder %s1344, 39
        %s1346 = scalar_select %p1345, %s1344, 39
        %s1347 = smul.addr %s1346, 8
        %s1348 = scalar_lea.vmem %s10, %s1347
      $region76: #{tpu_custom_call.1} parent=67 // pred_fallthru
        _
    $region68: #{tpu_custom_call.1} parent=5 // pred_fallthru
      _
  $region6: #{tpu_custom_call.1} parent=0 // loop_footer
    %s21 = sadd.s32 1, %s17
  $region7: #{tpu_custom_call.1} parent=0 // loop_footer_branch
    %16 = sbr.rel target = $region3
  $region8: #{tpu_custom_call.1} parent=0 // loop_exit
    _

</llo_original>
